<compile_context>
chip_gen: v7x
topology: tpu7x:2x2x1
jax: 0.10.0
libtpu: 0.0.40
codegen_flags: <defaults>
</compile_context>

<pallas_src>
import functools

import numpy as np

import jax
import jax.numpy as jnp
from jax.experimental import pallas as pl
from jax.experimental.pallas import tpu as pltpu


def _silu(v):
    # x * sigmoid(x).  exp runs on the EUP; the denominator uses the approximate
    # EUP reciprocal (per perf review) so the divide stays off the VPU.
    return v * pl.reciprocal(1.0 + jnp.exp(-v), approx=True)


def _pointwise(w, x, *, allow_bf16):
    """1x1 conv: w (c_out, c_in) applied to x (c_in, HW) -> (c_out, HW) in f32."""
    c_in = x.shape[0]
    if c_in >= 8:
        # Real ShuffleNetV2 widths -> one MXU matmul; bf16 inputs feed the MXU at
        # full rate on v6e/v7x while f32 accumulation preserves accuracy.
        if allow_bf16:
            w = w.astype(jnp.bfloat16)
            x = x.astype(jnp.bfloat16)
        return jnp.dot(w, x, preferred_element_type=jnp.float32)
    # Tiny widths (toy config): fully vectorized f32 VPU broadcast-MACs
    # (an MXU matmul would be <2% utilized here).
    out = w[:, 0:1] * x[0:1, :]
    for i in range(1, c_in):
        out = out + w[:, i:i + 1] * x[i:i + 1, :]
    return out


def _shuffle_block_kernel(x_ref, w1_ref, b1_ref, dwk_ref, w2_ref, b2_ref,
                          p1_ref, mask_ref, o_ref, *, H, W):
    # x_ref / o_ref : (1, C, H*W) lane-dense blocks (one image per grid step).
    # w1            : (c2, c2) pw1 weight with BN scale pre-folded.
    # b1            : (c2, 1)  fused BN bias.
    # dwk           : (c2, 9)  depthwise 3x3 taps, row-major.
    # w2 / b2       : (C, c2) / (C, 1) pw2 weight+bias scattered to ODD output rows
    #                 (channel shuffle folded in on the host; even rows are zero).
    # p1            : (C, c2) static 0/1 matrix scattering x1 to EVEN output rows.
    # mask_ref      : (9, H*W) f32 trace-time-precomputed validity masks.
    C = x_ref.shape[1]
    HW = x_ref.shape[2]
    c2 = C // 2

    x_all = x_ref[0]                        # (C, HW)
    x1 = x_all[:c2, :]                      # passthrough half   (c2, HW)
    x2 = x_all[c2:, :]                      # branch2 input half (c2, HW)

    # ---- 1x1 conv (BN scale folded into weights) + bias + SiLU ----
    y = _silu(_pointwise(w1_ref[...], x2, allow_bf16=True) + b1_ref[...])

    # ---- depthwise 3x3, stride 1, padding 1, on the flattened H*W lane axis ----
    # Shifts via pltpu.roll (XLU slot); the zero padding is realized by the
    # precomputed masks: every lane the roll wraps around corresponds exactly to a
    # position the mask zeroes out, so results match the zero-padded conv.
    dwk = dwk_ref[...]                      # (c2, 9)
    masks = mask_ref[...]                   # (9, HW)
    z = y * dwk[:, 4:5]                     # center tap: no roll, no mask
    for kh in range(3):
        for kw in range(3):
            if kh == 1 and kw == 1:
                continue
            off = (kh - 1) * W + (kw - 1)
            shifted = pltpu.roll(y, shift=(-off) % HW, axis=1)    # y[p + off]
            m = masks[kh * 3 + kw: kh * 3 + kw + 1, :]            # (1, HW)
            tap = dwk[:, kh * 3 + kw: kh * 3 + kw + 1]            # (c2, 1)
            z = z + shifted * (m * tap)     # mask folded into the tap coefficient

    # ---- 1x1 conv with channel shuffle folded into the (row-scattered) weights ----
    # Odd output rows hold branch2 (SiLU of pw2+BN); even rows are SiLU(0) == 0.
    o = _silu(_pointwise(w2_ref[...], z, allow_bf16=True) + b2_ref[...])
    # Even output rows: exact x1 passthrough via a 0/1 matmul kept in f32.
    o = o + _pointwise(p1_ref[...], x1, allow_bf16=False)

    # cat + channel_shuffle(groups=2) already realized -> ONE dense (C, HW) store.
    o_ref[0, :, :] = o.astype(o_ref.dtype)


@jax.jit
def inverted_residual1_forward(x, params):
    """stride=1 forward pass; x is NCHW, input_c == output_c."""
    B, C, H, W = x.shape
    c2 = C // 2
    HW = H * W

    # ---- host-side (trace-time) parameter prep ----
    # Fold inference-BN scale into the 1x1 conv weights.
    w1f = params["w1"] * params["s1"][:, None]                     # (c2, c2)
    b1v = params["b1"].reshape(c2, 1)
    w2f = params["w2"] * params["s2"][:, None]                     # (c2, c2)
    b2v = params["b2"].reshape(c2, 1)
    dwk = params["dwk"]                                            # (c2, 9)

    # Fold the groups=2 channel shuffle: pw2 output k goes to output channel 2k+1,
    # x1 channel k goes to output channel 2k (SiLU(0)=0 keeps even rows clean).
    w2_big = jnp.zeros((C, c2), w1f.dtype).at[1::2, :].set(w2f)    # (C, c2)
    b2_big = jnp.zeros((C, 1), w1f.dtype).at[1::2, :].set(b2v)     # (C, 1)
    p1_np = np.zeros((C, c2), np.float32)
    p1_np[0::2, :] = np.eye(c2, dtype=np.float32)
    p1 = jnp.asarray(p1_np)                                        # (C, c2)

    # Trace-time depthwise validity masks (depend only on static H, W).
    pos = np.arange(HW)
    row, col = pos // W, pos % W
    masks_np = np.zeros((9, HW), np.float32)
    for kh in range(3):
        for kw in range(3):
            dr, dc = kh - 1, kw - 1
            valid = ((row + dr >= 0) & (row + dr < H) &
                     (col + dc >= 0) & (col + dc < W))
            masks_np[kh * 3 + kw] = valid.astype(np.float32)
    masks = jnp.asarray(masks_np)                                  # (9, HW)

    xf = x.reshape(B, C, HW)                # lane-dense view; free bitcast

    def full(shape):
        return pl.BlockSpec(shape, lambda b, _s=shape: (0,) * len(_s))

    out = pl.pallas_call(
        functools.partial(_shuffle_block_kernel, H=H, W=W),
        out_shape=jax.ShapeDtypeStruct((B, C, HW), x.dtype),
        grid_spec=pltpu.PrefetchScalarGridSpec(
            num_scalar_prefetch=0,
            grid=(B,),
            in_specs=[
                pl.BlockSpec((1, C, HW), lambda b: (b, 0, 0)),
                full((c2, c2)),            # w1 (scale-folded)
                full((c2, 1)),             # b1
                full((c2, 9)),             # depthwise taps
                full((C, c2)),             # w2 (scale-folded, shuffle-scattered)
                full((C, 1)),              # b2 (shuffle-scattered)
                full((C, c2)),             # x1 passthrough scatter matrix
                full((9, HW)),             # precomputed dw validity masks
            ],
            out_specs=pl.BlockSpec((1, C, HW), lambda b: (b, 0, 0)),
        ),
        compiler_params=pltpu.CompilerParams(
            dimension_semantics=("parallel",)),   # batch shards across TCs on v7x
    )(xf, w1f, b1v, dwk, w2_big, b2_big, p1, masks)
    return out.reshape(B, C, H, W)


# ------------------------- pure-JAX reference & params -------------------------

def _silu_ref(v):
    return v * (1.0 / (1.0 + jnp.exp(-v)))


def channel_shuffle_ref(x, groups):
    B, C, H, W = x.shape
    return (x.reshape(B, groups, C // groups, H, W)
             .transpose(0, 2, 1, 3, 4)
             .reshape(B, C, H, W))


def reference_forward(x, params):
    B, C, H, W = x.shape
    c2 = C // 2
    x1, x2 = x[:, :c2], x[:, c2:]
    y = jnp.einsum('bihw,oi->bohw', x2, params["w1"])
    y = y * params["s1"][None, :, None, None] + params["b1"][None, :, None, None]
    y = _silu_ref(y)
    yp = jnp.pad(y, ((0, 0), (0, 0), (1, 1), (1, 1)))
    z = jnp.zeros_like(y)
    for kh in range(3):
        for kw in range(3):
            tap = params["dwk"][:, kh * 3 + kw][None, :, None, None]
            z = z + yp[:, :, kh:kh + H, kw:kw + W] * tap
    o = jnp.einsum('bihw,oi->bohw', z, params["w2"])
    o = o * params["s2"][None, :, None, None] + params["b2"][None, :, None, None]
    o = _silu_ref(o)
    out = jnp.concatenate([x1, o], axis=1)
    return channel_shuffle_ref(out, 2)


def init_params(key, c2):
    ks = jax.random.split(key, 11)
    eps = 1e-5
    w1 = 0.5 * jax.random.normal(ks[0], (c2, c2), jnp.float32)   # pw1 weight [out,in]
    dwk = 0.3 * jax.random.normal(ks[1], (c2, 9), jnp.float32)   # dw 3x3, flattened
    w2 = 0.5 * jax.random.normal(ks[2], (c2, c2), jnp.float32)   # pw2 weight [out,in]
    g1 = 1.0 + 0.1 * jax.random.normal(ks[3], (c2,), jnp.float32)
    be1 = 0.1 * jax.random.normal(ks[4], (c2,), jnp.float32)
    m1 = 0.1 * jax.random.normal(ks[5], (c2,), jnp.float32)
    v1 = 0.5 + jax.random.uniform(ks[6], (c2,), jnp.float32)
    g2 = 1.0 + 0.1 * jax.random.normal(ks[7], (c2,), jnp.float32)
    be2 = 0.1 * jax.random.normal(ks[8], (c2,), jnp.float32)
    m2 = 0.1 * jax.random.normal(ks[9], (c2,), jnp.float32)
    v2 = 0.5 + jax.random.uniform(ks[10], (c2,), jnp.float32)
    s1 = g1 / jnp.sqrt(v1 + eps)
    b1 = be1 - m1 * s1
    s2 = g2 / jnp.sqrt(v2 + eps)
    b2 = be2 - m2 * s2
    return dict(w1=w1, s1=s1, b1=b1, dwk=dwk, w2=w2, s2=s2, b2=b2)


if __name__ == "__main__":
    key = jax.random.PRNGKey(0)
    kx, kp = jax.random.split(key)
    B, C, H, W = 2, 4, 16, 16              # input_c = output_c = 4, stride = 1
    x = jax.random.normal(kx, (B, C, H, W), jnp.float32)
    params = init_params(kp, C // 2)

    out = jax.block_until_ready(inverted_residual1_forward(x, params))
    ref = reference_forward(x, params)

    assert out.shape == (B, C, H, W)
    max_err = float(jnp.max(jnp.abs(out - ref)))
    # Tolerance loosened from 2e-4 because the kernel's SiLU uses the approximate
    # EUP reciprocal (per perf review); typical observed error is well below 1e-3.
    assert jnp.allclose(out, ref, atol=1e-2, rtol=1e-2), max_err
    print("KERNEL_OK")
</pallas_src>

<mosaic_0001>
module attributes {stable_mosaic.version = 11 : i64} {
  func.func @_shuffle_block_kernel(%arg0: i32, %arg1: memref<1x4x256xf32, #tpu.memory_space<vmem>>, %arg2: memref<2x2xf32, #tpu.memory_space<vmem>>, %arg3: memref<2x1xf32, #tpu.memory_space<vmem>>, %arg4: memref<2x9xf32, #tpu.memory_space<vmem>>, %arg5: memref<4x2xf32, #tpu.memory_space<vmem>>, %arg6: memref<4x1xf32, #tpu.memory_space<vmem>>, %arg7: memref<4x2xf32, #tpu.memory_space<vmem>>, %arg8: memref<9x256xf32, #tpu.memory_space<vmem>>, %arg9: memref<1x4x256xf32, #tpu.memory_space<vmem>>) attributes {dimension_semantics = [#tpu.dimension_semantics<parallel>], iteration_bounds = array<i64: 2>, scalar_prefetch = 0 : i64, scratch_operands = 0 : i64, tpu.core_type = #tpu.core_type<tc>, window_params = [{transform_indices = @transform_0, window_bounds = array<i64: 1, 4, 256>}, {pipeline_mode = #tpu.pipeline_mode<synchronous>, transform_indices = @transform_1, window_bounds = array<i64: 2, 2>}, {pipeline_mode = #tpu.pipeline_mode<synchronous>, transform_indices = @transform_2, window_bounds = array<i64: 2, 1>}, {pipeline_mode = #tpu.pipeline_mode<synchronous>, transform_indices = @transform_3, window_bounds = array<i64: 2, 9>}, {pipeline_mode = #tpu.pipeline_mode<synchronous>, transform_indices = @transform_4, window_bounds = array<i64: 4, 2>}, {pipeline_mode = #tpu.pipeline_mode<synchronous>, transform_indices = @transform_5, window_bounds = array<i64: 4, 1>}, {pipeline_mode = #tpu.pipeline_mode<synchronous>, transform_indices = @transform_6, window_bounds = array<i64: 4, 2>}, {pipeline_mode = #tpu.pipeline_mode<synchronous>, transform_indices = @transform_7, window_bounds = array<i64: 9, 256>}, {transform_indices = @transform_8, window_bounds = array<i64: 1, 4, 256>}]} {
    %c0 = arith.constant 0 : index
    %c0_0 = arith.constant 0 : index
    %c0_1 = arith.constant 0 : index
    %0 = vector.load %arg1[%c0, %c0_0, %c0_1] : memref<1x4x256xf32, #tpu.memory_space<vmem>>, vector<1x4x256xf32>
    %1 = vector.shape_cast %0 : vector<1x4x256xf32> to vector<4x256xf32>
    %2 = vector.extract_strided_slice %1 {offsets = [0, 0], sizes = [2, 256], strides = [1, 1]} : vector<4x256xf32> to vector<2x256xf32>
    %3 = vector.extract_strided_slice %1 {offsets = [2, 0], sizes = [2, 256], strides = [1, 1]} : vector<4x256xf32> to vector<2x256xf32>
    %c0_2 = arith.constant 0 : index
    %c0_3 = arith.constant 0 : index
    %4 = vector.load %arg2[%c0_2, %c0_3] : memref<2x2xf32, #tpu.memory_space<vmem>>, vector<2x2xf32>
    %5 = vector.extract_strided_slice %4 {offsets = [0, 0], sizes = [2, 1], strides = [1, 1]} : vector<2x2xf32> to vector<2x1xf32>
    %6 = vector.extract_strided_slice %3 {offsets = [0, 0], sizes = [1, 256], strides = [1, 1]} : vector<2x256xf32> to vector<1x256xf32>
    %7 = vector.broadcast %5 : vector<2x1xf32> to vector<2x256xf32>
    %8 = vector.broadcast %6 : vector<1x256xf32> to vector<2x256xf32>
    %9 = arith.mulf %7, %8 : vector<2x256xf32>
    %10 = vector.extract_strided_slice %4 {offsets = [0, 1], sizes = [2, 1], strides = [1, 1]} : vector<2x2xf32> to vector<2x1xf32>
    %11 = vector.extract_strided_slice %3 {offsets = [1, 0], sizes = [1, 256], strides = [1, 1]} : vector<2x256xf32> to vector<1x256xf32>
    %12 = vector.broadcast %10 : vector<2x1xf32> to vector<2x256xf32>
    %13 = vector.broadcast %11 : vector<1x256xf32> to vector<2x256xf32>
    %14 = arith.mulf %12, %13 : vector<2x256xf32>
    %15 = arith.addf %9, %14 : vector<2x256xf32>
    %c0_4 = arith.constant 0 : index
    %c0_5 = arith.constant 0 : index
    %16 = vector.load %arg3[%c0_4, %c0_5] : memref<2x1xf32, #tpu.memory_space<vmem>>, vector<2x1xf32>
    %17 = vector.broadcast %16 : vector<2x1xf32> to vector<2x256xf32>
    %18 = arith.addf %15, %17 : vector<2x256xf32>
    %cst = arith.constant 0.000000e+00 : f32
    %19 = vector.broadcast %cst : f32 to vector<2x256xf32>
    %20 = arith.subf %19, %18 : vector<2x256xf32>
    %21 = math.exp %20 : vector<2x256xf32>
    %cst_6 = arith.constant 1.000000e+00 : f32
    %22 = vector.broadcast %cst_6 : f32 to vector<2x256xf32>
    %23 = arith.addf %22, %21 : vector<2x256xf32>
    %24 = tpu.reciprocal %23 {approx = true} : vector<2x256xf32> -> vector<2x256xf32>
    %25 = arith.mulf %18, %24 : vector<2x256xf32>
    %c0_7 = arith.constant 0 : index
    %c0_8 = arith.constant 0 : index
    %26 = vector.load %arg4[%c0_7, %c0_8] : memref<2x9xf32, #tpu.memory_space<vmem>>, vector<2x9xf32>
    %c0_9 = arith.constant 0 : index
    %c0_10 = arith.constant 0 : index
    %27 = vector.load %arg8[%c0_9, %c0_10] : memref<9x256xf32, #tpu.memory_space<vmem>>, vector<9x256xf32>
    %28 = vector.extract_strided_slice %26 {offsets = [0, 4], sizes = [2, 1], strides = [1, 1]} : vector<2x9xf32> to vector<2x1xf32>
    %29 = vector.broadcast %28 : vector<2x1xf32> to vector<2x256xf32>
    %30 = arith.mulf %25, %29 : vector<2x256xf32>
    %c17_i32 = arith.constant 17 : i32
    %31 = tpu.dynamic_rotate %25 by %c17_i32 dim 1 : vector<2x256xf32>, i32 -> vector<2x256xf32>
    %32 = vector.extract_strided_slice %27 {offsets = [0, 0], sizes = [1, 256], strides = [1, 1]} : vector<9x256xf32> to vector<1x256xf32>
    %33 = vector.extract_strided_slice %26 {offsets = [0, 0], sizes = [2, 1], strides = [1, 1]} : vector<2x9xf32> to vector<2x1xf32>
    %34 = vector.broadcast %32 : vector<1x256xf32> to vector<2x256xf32>
    %35 = vector.broadcast %33 : vector<2x1xf32> to vector<2x256xf32>
    %36 = arith.mulf %34, %35 : vector<2x256xf32>
    %37 = arith.mulf %31, %36 : vector<2x256xf32>
    %38 = arith.addf %30, %37 : vector<2x256xf32>
    %c16_i32 = arith.constant 16 : i32
    %39 = tpu.dynamic_rotate %25 by %c16_i32 dim 1 : vector<2x256xf32>, i32 -> vector<2x256xf32>
    %40 = vector.extract_strided_slice %27 {offsets = [1, 0], sizes = [1, 256], strides = [1, 1]} : vector<9x256xf32> to vector<1x256xf32>
    %41 = vector.extract_strided_slice %26 {offsets = [0, 1], sizes = [2, 1], strides = [1, 1]} : vector<2x9xf32> to vector<2x1xf32>
    %42 = vector.broadcast %40 : vector<1x256xf32> to vector<2x256xf32>
    %43 = vector.broadcast %41 : vector<2x1xf32> to vector<2x256xf32>
    %44 = arith.mulf %42, %43 : vector<2x256xf32>
    %45 = arith.mulf %39, %44 : vector<2x256xf32>
    %46 = arith.addf %38, %45 : vector<2x256xf32>
    %c15_i32 = arith.constant 15 : i32
    %47 = tpu.dynamic_rotate %25 by %c15_i32 dim 1 : vector<2x256xf32>, i32 -> vector<2x256xf32>
    %48 = vector.extract_strided_slice %27 {offsets = [2, 0], sizes = [1, 256], strides = [1, 1]} : vector<9x256xf32> to vector<1x256xf32>
    %49 = vector.extract_strided_slice %26 {offsets = [0, 2], sizes = [2, 1], strides = [1, 1]} : vector<2x9xf32> to vector<2x1xf32>
    %50 = vector.broadcast %48 : vector<1x256xf32> to vector<2x256xf32>
    %51 = vector.broadcast %49 : vector<2x1xf32> to vector<2x256xf32>
    %52 = arith.mulf %50, %51 : vector<2x256xf32>
    %53 = arith.mulf %47, %52 : vector<2x256xf32>
    %54 = arith.addf %46, %53 : vector<2x256xf32>
    %c1_i32 = arith.constant 1 : i32
    %55 = tpu.dynamic_rotate %25 by %c1_i32 dim 1 : vector<2x256xf32>, i32 -> vector<2x256xf32>
    %56 = vector.extract_strided_slice %27 {offsets = [3, 0], sizes = [1, 256], strides = [1, 1]} : vector<9x256xf32> to vector<1x256xf32>
    %57 = vector.extract_strided_slice %26 {offsets = [0, 3], sizes = [2, 1], strides = [1, 1]} : vector<2x9xf32> to vector<2x1xf32>
    %58 = vector.broadcast %56 : vector<1x256xf32> to vector<2x256xf32>
    %59 = vector.broadcast %57 : vector<2x1xf32> to vector<2x256xf32>
    %60 = arith.mulf %58, %59 : vector<2x256xf32>
    %61 = arith.mulf %55, %60 : vector<2x256xf32>
    %62 = arith.addf %54, %61 : vector<2x256xf32>
    %c255_i32 = arith.constant 255 : i32
    %63 = tpu.dynamic_rotate %25 by %c255_i32 dim 1 : vector<2x256xf32>, i32 -> vector<2x256xf32>
    %64 = vector.extract_strided_slice %27 {offsets = [5, 0], sizes = [1, 256], strides = [1, 1]} : vector<9x256xf32> to vector<1x256xf32>
    %65 = vector.extract_strided_slice %26 {offsets = [0, 5], sizes = [2, 1], strides = [1, 1]} : vector<2x9xf32> to vector<2x1xf32>
    %66 = vector.broadcast %64 : vector<1x256xf32> to vector<2x256xf32>
    %67 = vector.broadcast %65 : vector<2x1xf32> to vector<2x256xf32>
    %68 = arith.mulf %66, %67 : vector<2x256xf32>
    %69 = arith.mulf %63, %68 : vector<2x256xf32>
    %70 = arith.addf %62, %69 : vector<2x256xf32>
    %c241_i32 = arith.constant 241 : i32
    %71 = tpu.dynamic_rotate %25 by %c241_i32 dim 1 : vector<2x256xf32>, i32 -> vector<2x256xf32>
    %72 = vector.extract_strided_slice %27 {offsets = [6, 0], sizes = [1, 256], strides = [1, 1]} : vector<9x256xf32> to vector<1x256xf32>
    %73 = vector.extract_strided_slice %26 {offsets = [0, 6], sizes = [2, 1], strides = [1, 1]} : vector<2x9xf32> to vector<2x1xf32>
    %74 = vector.broadcast %72 : vector<1x256xf32> to vector<2x256xf32>
    %75 = vector.broadcast %73 : vector<2x1xf32> to vector<2x256xf32>
    %76 = arith.mulf %74, %75 : vector<2x256xf32>
    %77 = arith.mulf %71, %76 : vector<2x256xf32>
    %78 = arith.addf %70, %77 : vector<2x256xf32>
    %c240_i32 = arith.constant 240 : i32
    %79 = tpu.dynamic_rotate %25 by %c240_i32 dim 1 : vector<2x256xf32>, i32 -> vector<2x256xf32>
    %80 = vector.extract_strided_slice %27 {offsets = [7, 0], sizes = [1, 256], strides = [1, 1]} : vector<9x256xf32> to vector<1x256xf32>
    %81 = vector.extract_strided_slice %26 {offsets = [0, 7], sizes = [2, 1], strides = [1, 1]} : vector<2x9xf32> to vector<2x1xf32>
    %82 = vector.broadcast %80 : vector<1x256xf32> to vector<2x256xf32>
    %83 = vector.broadcast %81 : vector<2x1xf32> to vector<2x256xf32>
    %84 = arith.mulf %82, %83 : vector<2x256xf32>
    %85 = arith.mulf %79, %84 : vector<2x256xf32>
    %86 = arith.addf %78, %85 : vector<2x256xf32>
    %c239_i32 = arith.constant 239 : i32
    %87 = tpu.dynamic_rotate %25 by %c239_i32 dim 1 : vector<2x256xf32>, i32 -> vector<2x256xf32>
    %88 = vector.extract_strided_slice %27 {offsets = [8, 0], sizes = [1, 256], strides = [1, 1]} : vector<9x256xf32> to vector<1x256xf32>
    %89 = vector.extract_strided_slice %26 {offsets = [0, 8], sizes = [2, 1], strides = [1, 1]} : vector<2x9xf32> to vector<2x1xf32>
    %90 = vector.broadcast %88 : vector<1x256xf32> to vector<2x256xf32>
    %91 = vector.broadcast %89 : vector<2x1xf32> to vector<2x256xf32>
    %92 = arith.mulf %90, %91 : vector<2x256xf32>
    %93 = arith.mulf %87, %92 : vector<2x256xf32>
    %94 = arith.addf %86, %93 : vector<2x256xf32>
    %c0_11 = arith.constant 0 : index
    %c0_12 = arith.constant 0 : index
    %95 = vector.load %arg5[%c0_11, %c0_12] : memref<4x2xf32, #tpu.memory_space<vmem>>, vector<4x2xf32>
    %96 = vector.extract_strided_slice %95 {offsets = [0, 0], sizes = [4, 1], strides = [1, 1]} : vector<4x2xf32> to vector<4x1xf32>
    %97 = vector.extract_strided_slice %94 {offsets = [0, 0], sizes = [1, 256], strides = [1, 1]} : vector<2x256xf32> to vector<1x256xf32>
    %98 = vector.broadcast %96 : vector<4x1xf32> to vector<4x256xf32>
    %99 = vector.broadcast %97 : vector<1x256xf32> to vector<4x256xf32>
    %100 = arith.mulf %98, %99 : vector<4x256xf32>
    %101 = vector.extract_strided_slice %95 {offsets = [0, 1], sizes = [4, 1], strides = [1, 1]} : vector<4x2xf32> to vector<4x1xf32>
    %102 = vector.extract_strided_slice %94 {offsets = [1, 0], sizes = [1, 256], strides = [1, 1]} : vector<2x256xf32> to vector<1x256xf32>
    %103 = vector.broadcast %101 : vector<4x1xf32> to vector<4x256xf32>
    %104 = vector.broadcast %102 : vector<1x256xf32> to vector<4x256xf32>
    %105 = arith.mulf %103, %104 : vector<4x256xf32>
    %106 = arith.addf %100, %105 : vector<4x256xf32>
    %c0_13 = arith.constant 0 : index
    %c0_14 = arith.constant 0 : index
    %107 = vector.load %arg6[%c0_13, %c0_14] : memref<4x1xf32, #tpu.memory_space<vmem>>, vector<4x1xf32>
    %108 = vector.broadcast %107 : vector<4x1xf32> to vector<4x256xf32>
    %109 = arith.addf %106, %108 : vector<4x256xf32>
    %cst_15 = arith.constant 0.000000e+00 : f32
    %110 = vector.broadcast %cst_15 : f32 to vector<4x256xf32>
    %111 = arith.subf %110, %109 : vector<4x256xf32>
    %112 = math.exp %111 : vector<4x256xf32>
    %cst_16 = arith.constant 1.000000e+00 : f32
    %113 = vector.broadcast %cst_16 : f32 to vector<4x256xf32>
    %114 = arith.addf %113, %112 : vector<4x256xf32>
    %115 = tpu.reciprocal %114 {approx = true} : vector<4x256xf32> -> vector<4x256xf32>
    %116 = arith.mulf %109, %115 : vector<4x256xf32>
    %c0_17 = arith.constant 0 : index
    %c0_18 = arith.constant 0 : index
    %117 = vector.load %arg7[%c0_17, %c0_18] : memref<4x2xf32, #tpu.memory_space<vmem>>, vector<4x2xf32>
    %118 = vector.extract_strided_slice %117 {offsets = [0, 0], sizes = [4, 1], strides = [1, 1]} : vector<4x2xf32> to vector<4x1xf32>
    %119 = vector.extract_strided_slice %2 {offsets = [0, 0], sizes = [1, 256], strides = [1, 1]} : vector<2x256xf32> to vector<1x256xf32>
    %120 = vector.broadcast %118 : vector<4x1xf32> to vector<4x256xf32>
    %121 = vector.broadcast %119 : vector<1x256xf32> to vector<4x256xf32>
    %122 = arith.mulf %120, %121 : vector<4x256xf32>
    %123 = vector.extract_strided_slice %117 {offsets = [0, 1], sizes = [4, 1], strides = [1, 1]} : vector<4x2xf32> to vector<4x1xf32>
    %124 = vector.extract_strided_slice %2 {offsets = [1, 0], sizes = [1, 256], strides = [1, 1]} : vector<2x256xf32> to vector<1x256xf32>
    %125 = vector.broadcast %123 : vector<4x1xf32> to vector<4x256xf32>
    %126 = vector.broadcast %124 : vector<1x256xf32> to vector<4x256xf32>
    %127 = arith.mulf %125, %126 : vector<4x256xf32>
    %128 = arith.addf %122, %127 : vector<4x256xf32>
    %129 = arith.addf %116, %128 : vector<4x256xf32>
    %c0_19 = arith.constant 0 : index
    %c0_20 = arith.constant 0 : index
    %c0_21 = arith.constant 0 : index
    %130 = vector.load %arg9[%c0_19, %c0_20, %c0_21] : memref<1x4x256xf32, #tpu.memory_space<vmem>>, vector<1x4x256xf32>
    %131 = vector.shape_cast %130 : vector<1x4x256xf32> to vector<4x256xf32>
    %132 = vector.shape_cast %129 : vector<4x256xf32> to vector<1x4x256xf32>
    tpu.vector_store %arg9[%c0_19, %c0_20, %c0_21], %132 {strides = array<i32>} : memref<1x4x256xf32, #tpu.memory_space<vmem>>, vector<1x4x256xf32>,
    return
  }
  func.func @transform_0(%arg0: i32) -> (i32, i32, i32) {
    %c0_i32 = arith.constant 0 : i32
    %c0_i32_0 = arith.constant 0 : i32
    %c0_i32_1 = arith.constant 0 : i32
    return %arg0, %c0_i32, %c0_i32_0 : i32, i32, i32
  }
  func.func @transform_1(%arg0: i32) -> (i32, i32) {
    %c0_i32 = arith.constant 0 : i32
    %c0_i32_0 = arith.constant 0 : i32
    %c0_i32_1 = arith.constant 0 : i32
    return %c0_i32, %c0_i32_0 : i32, i32
  }
  func.func @transform_2(%arg0: i32) -> (i32, i32) {
    %c0_i32 = arith.constant 0 : i32
    %c0_i32_0 = arith.constant 0 : i32
    %c0_i32_1 = arith.constant 0 : i32
    return %c0_i32, %c0_i32_0 : i32, i32
  }
  func.func @transform_3(%arg0: i32) -> (i32, i32) {
    %c0_i32 = arith.constant 0 : i32
    %c0_i32_0 = arith.constant 0 : i32
    %c0_i32_1 = arith.constant 0 : i32
    return %c0_i32, %c0_i32_0 : i32, i32
  }
  func.func @transform_4(%arg0: i32) -> (i32, i32) {
    %c0_i32 = arith.constant 0 : i32
    %c0_i32_0 = arith.constant 0 : i32
    %c0_i32_1 = arith.constant 0 : i32
    return %c0_i32, %c0_i32_0 : i32, i32
  }
  func.func @transform_5(%arg0: i32) -> (i32, i32) {
    %c0_i32 = arith.constant 0 : i32
    %c0_i32_0 = arith.constant 0 : i32
    %c0_i32_1 = arith.constant 0 : i32
    return %c0_i32, %c0_i32_0 : i32, i32
  }
  func.func @transform_6(%arg0: i32) -> (i32, i32) {
    %c0_i32 = arith.constant 0 : i32
    %c0_i32_0 = arith.constant 0 : i32
    %c0_i32_1 = arith.constant 0 : i32
    return %c0_i32, %c0_i32_0 : i32, i32
  }
  func.func @transform_7(%arg0: i32) -> (i32, i32) {
    %c0_i32 = arith.constant 0 : i32
    %c0_i32_0 = arith.constant 0 : i32
    %c0_i32_1 = arith.constant 0 : i32
    return %c0_i32, %c0_i32_0 : i32, i32
  }
  func.func @transform_8(%arg0: i32) -> (i32, i32, i32) {
    %c0_i32 = arith.constant 0 : i32
    %c0_i32_0 = arith.constant 0 : i32
    %c0_i32_1 = arith.constant 0 : i32
    return %arg0, %c0_i32, %c0_i32_0 : i32, i32, i32
  }
}

</mosaic_0001>

<llo_original>
// kernel: inverted_residual1_forward.1
$region0: #{inverted_residual1_forward.1}
  #allocation0 [shape = 'u32[]', space=smem, size = 0x4, offset = 0x4, fixed_abs, tag = 'smem constant byte address 0x4 - core index']
  #allocation1 [shape = 'u32[144,128]{1,0:T(1,128)}', space=vmem, size = 0x12000, scoped, tag = 'internal scratch']
  %s0 = inlined_call_operand.vmem [shape: f32[2,4,256], index: 0, kind: input, shape index: {}]
  %s1 = inlined_call_operand.vmem [shape: f32[2,2], index: 1, kind: input, shape index: {}]
  %s2 = inlined_call_operand.vmem [shape: f32[2,1], index: 2, kind: input, shape index: {}]
  %s3 = inlined_call_operand.vmem [shape: f32[2,9], index: 3, kind: input, shape index: {}]
  %s4 = inlined_call_operand.vmem [shape: f32[4,2], index: 4, kind: input, shape index: {}]
  %s5 = inlined_call_operand.vmem [shape: f32[4,1], index: 5, kind: input, shape index: {}]
  %s6 = inlined_call_operand.vmem [shape: f32[4,2], index: 6, kind: input, shape index: {}]
  %s7 = inlined_call_operand.vmem [shape: f32[9,256], index: 7, kind: input, shape index: {}]
  %s8 = inlined_call_operand.vmem [shape: f32[2,4,256], index: 8, kind: output, shape index: {}]
  %s9 = sld [smem:[#allocation0]]
  $region65: #{inverted_residual1_forward.1} parent=0
    _
  %s11 = ssub.s32 1, %s9
  %s12 = scalar_select 0, %s11, %s9
  loop: start=0, step=1, limit=4
  $region2: #{inverted_residual1_forward.1} parent=0 // loop_pre_header
    _
  $region3: #{inverted_residual1_forward.1} parent=0 // loop_header
    %s14 = sphi 0, %s18
    %p15 = scmp.ge.s32.totalorder %s14, 4
    %s24 = sphi 0, %s26
    %s27 = sphi 0, %s24
    %s28 = sphi 0, %s27
    %s44 = sphi 0, %s28
    %s48 = sphi 0, %s48
    %s50 = sphi 0, %s48
    %s51 = sphi 0, %s50
    %s65 = sphi 0, %s51
    %s69 = sphi 0, %s69
    %s71 = sphi 0, %s69
    %s72 = sphi 0, %s71
    %s86 = sphi 0, %s72
    %s90 = sphi 0, %s90
    %s92 = sphi 0, %s90
    %s93 = sphi 0, %s92
    %s107 = sphi 0, %s93
    %s111 = sphi 0, %s111
    %s113 = sphi 0, %s111
    %s114 = sphi 0, %s113
    %s128 = sphi 0, %s114
    %s132 = sphi 0, %s132
    %s134 = sphi 0, %s132
    %s135 = sphi 0, %s134
    %s149 = sphi 0, %s135
    %s153 = sphi 0, %s153
    %s155 = sphi 0, %s153
    %s156 = sphi 0, %s155
    %s170 = sphi 0, %s156
    %s174 = sphi 0, %s174
    %s176 = sphi 0, %s174
    %s177 = sphi 0, %s176
    %s191 = sphi 0, %s177
    %s197 = sphi 0, %s199
    %s200 = sphi 0, %s197
    %s201 = sphi 0, %s200
    %s217 = sphi 0, %s201
  $region4: #{inverted_residual1_forward.1} parent=0 // loop_header_branch
    %17 = sbr.rel (%p15) target = $region8
  $region5: #{inverted_residual1_forward.1} parent=0 // loop_body
    %s19 = ssub.s32 %s14, 1
    %s20 = ssub.s32 %s14, 2
    %s21 = sadd.s32 %s14, 1
    %s22 = ssub.s32 %s14, %s21
    %p23 = scmp.eq.s32.totalorder %s22, 0
    %s25 = sadd.s32 %s24, 1
    %s26 = scalar_select %p23, %s24, %s25
    %p29 = pneg %p23
    %p30 = scmp.eq.s32.totalorder %s14, 1
    %p31 = por %p29, %p30
    %p32 = scmp.ne.s32.totalorder %s24, %s27
    %p33 = scmp.eq.s32.totalorder %s14, 0
    %p34 = por %p32, %p33
    %p35 = scmp.ne.s32.totalorder %s24, %s27
    %p36 = scmp.eq.s32.totalorder %s19, 1
    %p37 = por %p35, %p36
    %p38 = scmp.ne.s32.totalorder %s27, %s28
    %p39 = scmp.eq.s32.totalorder %s19, 0
    %p40 = por %p38, %p39
    %p41 = scmp.ne.s32.totalorder %s27, %s28
    %p42 = scmp.eq.s32.totalorder %s20, 1
    %p43 = por %p41, %p42
    %p45 = scmp.ne.s32.totalorder %s28, %s44
    %p46 = scmp.eq.s32.totalorder %s20, 0
    %p47 = por %p45, %p46
    %s49 = sadd.s32 %s48, 1
    %p52 = scmp.eq.s32.totalorder %s14, 1
    %p53 = scmp.ne.s32.totalorder %s48, %s50
    %p54 = scmp.eq.s32.totalorder %s14, 0
    %p55 = por %p53, %p54
    %p56 = scmp.ne.s32.totalorder %s48, %s50
    %p57 = scmp.eq.s32.totalorder %s19, 1
    %p58 = por %p56, %p57
    %p59 = scmp.ne.s32.totalorder %s50, %s51
    %p60 = scmp.eq.s32.totalorder %s19, 0
    %p61 = por %p59, %p60
    %p62 = scmp.ne.s32.totalorder %s50, %s51
    %p63 = scmp.eq.s32.totalorder %s20, 1
    %p64 = por %p62, %p63
    %p66 = scmp.ne.s32.totalorder %s51, %s65
    %p67 = scmp.eq.s32.totalorder %s20, 0
    %p68 = por %p66, %p67
    %s70 = sadd.s32 %s69, 1
    %p73 = scmp.eq.s32.totalorder %s14, 1
    %p74 = scmp.ne.s32.totalorder %s69, %s71
    %p75 = scmp.eq.s32.totalorder %s14, 0
    %p76 = por %p74, %p75
    %p77 = scmp.ne.s32.totalorder %s69, %s71
    %p78 = scmp.eq.s32.totalorder %s19, 1
    %p79 = por %p77, %p78
    %p80 = scmp.ne.s32.totalorder %s71, %s72
    %p81 = scmp.eq.s32.totalorder %s19, 0
    %p82 = por %p80, %p81
    %p83 = scmp.ne.s32.totalorder %s71, %s72
    %p84 = scmp.eq.s32.totalorder %s20, 1
    %p85 = por %p83, %p84
    %p87 = scmp.ne.s32.totalorder %s72, %s86
    %p88 = scmp.eq.s32.totalorder %s20, 0
    %p89 = por %p87, %p88
    %s91 = sadd.s32 %s90, 1
    %p94 = scmp.eq.s32.totalorder %s14, 1
    %p95 = scmp.ne.s32.totalorder %s90, %s92
    %p96 = scmp.eq.s32.totalorder %s14, 0
    %p97 = por %p95, %p96
    %p98 = scmp.ne.s32.totalorder %s90, %s92
    %p99 = scmp.eq.s32.totalorder %s19, 1
    %p100 = por %p98, %p99
    %p101 = scmp.ne.s32.totalorder %s92, %s93
    %p102 = scmp.eq.s32.totalorder %s19, 0
    %p103 = por %p101, %p102
    %p104 = scmp.ne.s32.totalorder %s92, %s93
    %p105 = scmp.eq.s32.totalorder %s20, 1
    %p106 = por %p104, %p105
    %p108 = scmp.ne.s32.totalorder %s93, %s107
    %p109 = scmp.eq.s32.totalorder %s20, 0
    %p110 = por %p108, %p109
    %s112 = sadd.s32 %s111, 1
    %p115 = scmp.eq.s32.totalorder %s14, 1
    %p116 = scmp.ne.s32.totalorder %s111, %s113
    %p117 = scmp.eq.s32.totalorder %s14, 0
    %p118 = por %p116, %p117
    %p119 = scmp.ne.s32.totalorder %s111, %s113
    %p120 = scmp.eq.s32.totalorder %s19, 1
    %p121 = por %p119, %p120
    %p122 = scmp.ne.s32.totalorder %s113, %s114
    %p123 = scmp.eq.s32.totalorder %s19, 0
    %p124 = por %p122, %p123
    %p125 = scmp.ne.s32.totalorder %s113, %s114
    %p126 = scmp.eq.s32.totalorder %s20, 1
    %p127 = por %p125, %p126
    %p129 = scmp.ne.s32.totalorder %s114, %s128
    %p130 = scmp.eq.s32.totalorder %s20, 0
    %p131 = por %p129, %p130
    %s133 = sadd.s32 %s132, 1
    %p136 = scmp.eq.s32.totalorder %s14, 1
    %p137 = scmp.ne.s32.totalorder %s132, %s134
    %p138 = scmp.eq.s32.totalorder %s14, 0
    %p139 = por %p137, %p138
    %p140 = scmp.ne.s32.totalorder %s132, %s134
    %p141 = scmp.eq.s32.totalorder %s19, 1
    %p142 = por %p140, %p141
    %p143 = scmp.ne.s32.totalorder %s134, %s135
    %p144 = scmp.eq.s32.totalorder %s19, 0
    %p145 = por %p143, %p144
    %p146 = scmp.ne.s32.totalorder %s134, %s135
    %p147 = scmp.eq.s32.totalorder %s20, 1
    %p148 = por %p146, %p147
    %p150 = scmp.ne.s32.totalorder %s135, %s149
    %p151 = scmp.eq.s32.totalorder %s20, 0
    %p152 = por %p150, %p151
    %s154 = sadd.s32 %s153, 1
    %p157 = scmp.eq.s32.totalorder %s14, 1
    %p158 = scmp.ne.s32.totalorder %s153, %s155
    %p159 = scmp.eq.s32.totalorder %s14, 0
    %p160 = por %p158, %p159
    %p161 = scmp.ne.s32.totalorder %s153, %s155
    %p162 = scmp.eq.s32.totalorder %s19, 1
    %p163 = por %p161, %p162
    %p164 = scmp.ne.s32.totalorder %s155, %s156
    %p165 = scmp.eq.s32.totalorder %s19, 0
    %p166 = por %p164, %p165
    %p167 = scmp.ne.s32.totalorder %s155, %s156
    %p168 = scmp.eq.s32.totalorder %s20, 1
    %p169 = por %p167, %p168
    %p171 = scmp.ne.s32.totalorder %s156, %s170
    %p172 = scmp.eq.s32.totalorder %s20, 0
    %p173 = por %p171, %p172
    %s175 = sadd.s32 %s174, 1
    %p178 = scmp.eq.s32.totalorder %s14, 1
    %p179 = scmp.ne.s32.totalorder %s174, %s176
    %p180 = scmp.eq.s32.totalorder %s14, 0
    %p181 = por %p179, %p180
    %p182 = scmp.ne.s32.totalorder %s174, %s176
    %p183 = scmp.eq.s32.totalorder %s19, 1
    %p184 = por %p182, %p183
    %p185 = scmp.ne.s32.totalorder %s176, %s177
    %p186 = scmp.eq.s32.totalorder %s19, 0
    %p187 = por %p185, %p186
    %p188 = scmp.ne.s32.totalorder %s176, %s177
    %p189 = scmp.eq.s32.totalorder %s20, 1
    %p190 = por %p188, %p189
    %p192 = scmp.ne.s32.totalorder %s177, %s191
    %p193 = scmp.eq.s32.totalorder %s20, 0
    %p194 = por %p192, %p193
    %s195 = ssub.s32 %s14, %s21
    %p196 = scmp.eq.s32.totalorder %s195, 0
    %s198 = sadd.s32 %s197, 1
    %s199 = scalar_select %p196, %s197, %s198
    %p202 = pneg %p196
    %p203 = scmp.eq.s32.totalorder %s14, 1
    %p204 = por %p202, %p203
    %p205 = scmp.ne.s32.totalorder %s197, %s200
    %p206 = scmp.eq.s32.totalorder %s14, 0
    %p207 = por %p205, %p206
    %p208 = scmp.ne.s32.totalorder %s197, %s200
    %p209 = scmp.eq.s32.totalorder %s19, 1
    %p210 = por %p208, %p209
    %p211 = scmp.ne.s32.totalorder %s200, %s201
    %p212 = scmp.eq.s32.totalorder %s19, 0
    %p213 = por %p211, %p212
    %p214 = scmp.ne.s32.totalorder %s200, %s201
    %p215 = scmp.eq.s32.totalorder %s20, 1
    %p216 = por %p214, %p215
    %p218 = scmp.ne.s32.totalorder %s201, %s217
    %p219 = scmp.eq.s32.totalorder %s20, 0
    %p220 = por %p218, %p219
    %p221 = scmp.le.s32.totalorder 1, %s14
    %p222 = scmp.lt.s32.totalorder %s14, 3
    %p223 = pnand %p221, %p222
    %p224 = pneg %p223
    // Predicated region
    $region9: #{inverted_residual1_forward.1} parent=5 // pred_check
      _
    $region10: #{inverted_residual1_forward.1} parent=5 // pred_check_branch
      %226 = sbr.rel (%p223) target = $region12
    $region11: #{inverted_residual1_forward.1} parent=5 // pred_region
      %s227 = ssub.s32 %s14, 1
      // Predicated region
      $region13: #{inverted_residual1_forward.1} parent=11 // pred_check
        %p228 = pneg %p61
      $region14: #{inverted_residual1_forward.1} parent=11 // pred_check_branch
        %230 = sbr.rel (%p228) target = $region16
      $region15: #{inverted_residual1_forward.1} parent=11 // pred_region
        _
      $region16: #{inverted_residual1_forward.1} parent=11 // pred_fallthru
        _
      // Predicated region
      $region17: #{inverted_residual1_forward.1} parent=11 // pred_check
        %p231 = pneg %p82
      $region18: #{inverted_residual1_forward.1} parent=11 // pred_check_branch
        %233 = sbr.rel (%p231) target = $region20
      $region19: #{inverted_residual1_forward.1} parent=11 // pred_region
        _
      $region20: #{inverted_residual1_forward.1} parent=11 // pred_fallthru
        _
      // Predicated region
      $region21: #{inverted_residual1_forward.1} parent=11 // pred_check
        %p234 = pneg %p103
      $region22: #{inverted_residual1_forward.1} parent=11 // pred_check_branch
        %236 = sbr.rel (%p234) target = $region24
      $region23: #{inverted_residual1_forward.1} parent=11 // pred_region
        _
      $region24: #{inverted_residual1_forward.1} parent=11 // pred_fallthru
        _
      // Predicated region
      $region25: #{inverted_residual1_forward.1} parent=11 // pred_check
        %p237 = pneg %p124
      $region26: #{inverted_residual1_forward.1} parent=11 // pred_check_branch
        %239 = sbr.rel (%p237) target = $region28
      $region27: #{inverted_residual1_forward.1} parent=11 // pred_region
        _
      $region28: #{inverted_residual1_forward.1} parent=11 // pred_fallthru
        _
      // Predicated region
      $region29: #{inverted_residual1_forward.1} parent=11 // pred_check
        %p240 = pneg %p145
      $region30: #{inverted_residual1_forward.1} parent=11 // pred_check_branch
        %242 = sbr.rel (%p240) target = $region32
      $region31: #{inverted_residual1_forward.1} parent=11 // pred_region
        _
      $region32: #{inverted_residual1_forward.1} parent=11 // pred_fallthru
        _
      // Predicated region
      $region33: #{inverted_residual1_forward.1} parent=11 // pred_check
        %p243 = pneg %p166
      $region34: #{inverted_residual1_forward.1} parent=11 // pred_check_branch
        %245 = sbr.rel (%p243) target = $region36
      $region35: #{inverted_residual1_forward.1} parent=11 // pred_region
        _
      $region36: #{inverted_residual1_forward.1} parent=11 // pred_fallthru
        _
      // Predicated region
      $region37: #{inverted_residual1_forward.1} parent=11 // pred_check
        %p246 = pneg %p187
      $region38: #{inverted_residual1_forward.1} parent=11 // pred_check_branch
        %248 = sbr.rel (%p246) target = $region40
      $region39: #{inverted_residual1_forward.1} parent=11 // pred_region
        _
      $region40: #{inverted_residual1_forward.1} parent=11 // pred_fallthru
        _
    $region12: #{inverted_residual1_forward.1} parent=5 // pred_fallthru
      _
    %p249 = scmp.lt.s32.totalorder %s14, 2
    // Predicated region
    $region41: #{inverted_residual1_forward.1} parent=5 // pred_check
      %p250 = pneg %p249
    $region42: #{inverted_residual1_forward.1} parent=5 // pred_check_branch
      %252 = sbr.rel (%p250) target = $region44
    $region43: #{inverted_residual1_forward.1} parent=5 // pred_region
      // Predicated region
      $region45: #{inverted_residual1_forward.1} parent=43 // pred_check
        %p253 = pneg %p34
      $region46: #{inverted_residual1_forward.1} parent=43 // pred_check_branch
        %255 = sbr.rel (%p253) target = $region48
      $region47: #{inverted_residual1_forward.1} parent=43 // pred_region
        %p256 = scmp.lt.s32.totalorder %s14, 1
        %s257 = scalar_select %p256, %s14, 1
        %s258 = smul.addr %s257, 2
        %s259 = smul.addr %s258, 4
        %s260 = scalar_lea.vmem %s0, %s259
      $region48: #{inverted_residual1_forward.1} parent=43 // pred_fallthru
        _
    $region44: #{inverted_residual1_forward.1} parent=5 // pred_fallthru
      _
    %p261 = scmp.le.s32.totalorder 1, %s14
    %p262 = scmp.lt.s32.totalorder %s14, 3
    %p263 = pnand %p261, %p262
    %p264 = pneg %p263
    // Predicated region
    $region49: #{inverted_residual1_forward.1} parent=5 // pred_check
      _
    $region50: #{inverted_residual1_forward.1} parent=5 // pred_check_branch
      %266 = sbr.rel (%p263) target = $region52
    $region51: #{inverted_residual1_forward.1} parent=5 // pred_region
      %s267 = ssub.s32 %s14, 1
      %p268 = scmp.lt.s32.totalorder %s19, 1
      %s269 = scalar_select %p268, %s19, 1
      %s270 = smul.addr %s269, 2
      %s271 = smul.addr %s270, 4
      %s272 = scalar_lea.vmem %s0, %s271
      %p273 = pneg %p40
      %p274 = pneg %p37
      %p275 = pneg %p61
      %p276 = pneg %p58
      %p277 = pneg %p82
      %p278 = pneg %p79
      %p279 = pneg %p103
      %p280 = pneg %p100
      %p281 = pneg %p124
      %p282 = pneg %p121
      %p283 = pneg %p145
      %p284 = pneg %p142
      %p285 = pneg %p166
      %p286 = pneg %p163
      %p287 = pneg %p187
      %p288 = pneg %p184
      %p289 = pneg %p213
      %p290 = pneg %p210
      %p291 = scmp.lt.s32.totalorder %s19, 1
      %s292 = scalar_select %p291, %s19, 1
      %s293 = smul.addr %s292, 2
      %s294 = smul.addr %s293, 4
      %s295 = scalar_lea.vmem %s8, %s294
      %p296 = scmp.lt.s32.totalorder %s19, 1
      %s297 = scalar_select %p296, %s19, 1
      %s298 = smul.addr %s297, 2
      %s299 = smul.addr %s298, 4
      %s300 = scalar_lea.vmem %s0, %s299
      %p301 = scmp.lt.s32.totalorder %s19, 1
      %s302 = scalar_select %p301, %s19, 1
      %s303 = smul.addr %s302, 2
      %s304 = smul.addr %s303, 4
      %s305 = scalar_lea.vmem %s8, %s304
      %v306 = vld [vmem:[%s300] sm:$0xff]
      %v307 = vld [vmem:[%s1] sm:$0x3]
      %309 = vset.pattern.permute.xlu0 0
      %310 = vperm.xlu0 %309, %v307
      %v311 = vpop.permute.xlu0 %310
      %v314 = vlaneseq
      %v315 = vshrl.u32 %v314, 7
      %v316 = vsub.s32 2, %v315
      %v317 = vrot.slane %v306, %v316
      %v318 = vlaneseq
      %v319 = vshrl.u32 %v318, 7
      %v320 = vsub.s32 6, %v319
      %v321 = vrot.slane %v306, %v320
      %v324 = vlaneseq
      %v325 = vshrl.u32 %v324, 7
      %v326 = vsub.s32 2, %v325
      %v327 = vrot.slane %v317, %v326
      %v328 = vlaneseq
      %v329 = vshrl.u32 %v328, 7
      %v330 = vsub.s32 2, %v329
      %v331 = vrot.slane %v321, %v330
      %v332 = vmul.f32 %v311, %v327
      %v333 = vmul.f32 %v311, %v331
      %334 = vset.pattern.permute.xlu0 1
      %335 = vperm.xlu0 %334, %v307
      %v336 = vpop.permute.xlu0 %335
      %v338 = vlaneseq
      %v339 = vshrl.u32 %v338, 7
      %v340 = vsub.s32 3, %v339
      %v341 = vrot.slane %v306, %v340
      %v342 = vlaneseq
      %v343 = vshrl.u32 %v342, 7
      %v344 = vsub.s32 7, %v343
      %v345 = vrot.slane %v306, %v344
      %v348 = vlaneseq
      %v349 = vshrl.u32 %v348, 7
      %v350 = vsub.s32 3, %v349
      %v351 = vrot.slane %v341, %v350
      %v352 = vlaneseq
      %v353 = vshrl.u32 %v352, 7
      %v354 = vsub.s32 3, %v353
      %v355 = vrot.slane %v345, %v354
      %v356 = vmul.f32 %v336, %v351
      %v357 = vmul.f32 %v336, %v355
      %v358 = vadd.f32 %v332, %v356
      %v359 = vadd.f32 %v333, %v357
      %v360 = vld [vmem:[%s2] sm:$0x3]
      %362 = vset.pattern.permute.xlu0 0
      %363 = vperm.xlu0 %362, %v360
      %v364 = vpop.permute.xlu0 %363
      %v366 = vadd.f32 %v358, %v364
      %v367 = vadd.f32 %v359, %v364
      %v368 = vsub.f32 0.0, %v366
      %v369 = vsub.f32 0.0, %v367
      %v370 = vmul.f32 %v368, 1.442695
      %v371 = vpow.pop %v370
      %v372 = vmul.f32 %v369, 1.442695
      %v373 = vpow.pop %v372
      %v374 = vadd.f32 %v371, 1.0
      %v375 = vadd.f32 %v373, 1.0
      %v376 = vrcp.pop %v374
      %v377 = vrcp.pop %v375
      %v378 = vmul.f32 %v366, %v376
      %v379 = vmul.f32 %v367, %v377
      %v380 = vld [vmem:[%s3] sm:$0x3]
      %v381 = vld [vmem:[%s7] sm:$0xff]
      %v382 = vld [vmem:[%s7 + $0x8] sm:$0xff]
      %v383 = vld [vmem:[%s7 + $0x10] sm:$0x1]
      %v384 = vld [vmem:[%s7 + $0x18] sm:$0x1]
      %386 = vset.pattern.permute.xlu0 4
      %387 = vperm.xlu0 %386, %v380
      %v388 = vpop.permute.xlu0 %387
      %v390 = vmul.f32 %v378, %v388
      %v391 = vmul.f32 %v379, %v388
      %392 = vrot.lane.b32.xlu0 %v378, 17
      %v393 = vpop.permute.xlu0 %392
      %394 = vrot.lane.b32.xlu0 %v379, 17
      %v395 = vpop.permute.xlu0 %394
      %v396 = vlaneseq
      %v397 = vand.u32 %v396, 127
      %vm398 = vcmp.lt.s32.totalorder %v397, 17
      %v399 = vsel %vm398, %v393, %v395
      %v400 = vsel %vm398, %v395, %v393
      %v401 = vlaneseq
      %v402 = vshrl.u32 %v401, 7
      %v403 = vsub.s32 0, %v402
      %v404 = vrot.slane %v381, %v403
      %v405 = vlaneseq
      %v406 = vshrl.u32 %v405, 7
      %v407 = vsub.s32 0, %v406
      %v408 = vrot.slane %v382, %v407
      %409 = vset.pattern.permute.xlu0 0
      %410 = vperm.xlu0 %409, %v380
      %v411 = vpop.permute.xlu0 %410
      %v413 = vmul.f32 %v404, %v411
      %v414 = vmul.f32 %v408, %v411
      %v415 = vmul.f32 %v400, %v413
      %v416 = vmul.f32 %v399, %v414
      %v417 = vadd.f32 %v390, %v415
      %v418 = vadd.f32 %v391, %v416
      %419 = vrot.lane.b32.xlu0 %v378, 16
      %v420 = vpop.permute.xlu0 %419
      %421 = vrot.lane.b32.xlu0 %v379, 16
      %v422 = vpop.permute.xlu0 %421
      %vm423 = vcmp.lt.s32.totalorder %v397, 16
      %v424 = vsel %vm423, %v420, %v422
      %v425 = vsel %vm423, %v422, %v420
      %v426 = vlaneseq
      %v427 = vshrl.u32 %v426, 7
      %v428 = vsub.s32 1, %v427
      %v429 = vrot.slane %v381, %v428
      %v430 = vlaneseq
      %v431 = vshrl.u32 %v430, 7
      %v432 = vsub.s32 1, %v431
      %v433 = vrot.slane %v382, %v432
      %434 = vset.pattern.permute.xlu0 1
      %435 = vperm.xlu0 %434, %v380
      %v436 = vpop.permute.xlu0 %435
      %v438 = vmul.f32 %v429, %v436
      %v439 = vmul.f32 %v433, %v436
      %v440 = vmul.f32 %v425, %v438
      %v441 = vmul.f32 %v424, %v439
      %v442 = vadd.f32 %v417, %v440
      %v443 = vadd.f32 %v418, %v441
      %444 = vrot.lane.b32.xlu0 %v378, 15
      %v445 = vpop.permute.xlu0 %444
      %446 = vrot.lane.b32.xlu0 %v379, 15
      %v447 = vpop.permute.xlu0 %446
      %vm448 = vcmp.lt.s32.totalorder %v397, 15
      %v449 = vsel %vm448, %v445, %v447
      %v450 = vsel %vm448, %v447, %v445
      %v451 = vlaneseq
      %v452 = vshrl.u32 %v451, 7
      %v453 = vsub.s32 2, %v452
      %v454 = vrot.slane %v381, %v453
      %v455 = vlaneseq
      %v456 = vshrl.u32 %v455, 7
      %v457 = vsub.s32 2, %v456
      %v458 = vrot.slane %v382, %v457
      %459 = vset.pattern.permute.xlu0 2
      %460 = vperm.xlu0 %459, %v380
      %v461 = vpop.permute.xlu0 %460
      %v463 = vmul.f32 %v454, %v461
      %v464 = vmul.f32 %v458, %v461
      %v465 = vmul.f32 %v450, %v463
      %v466 = vmul.f32 %v449, %v464
      %v467 = vadd.f32 %v442, %v465
      %v468 = vadd.f32 %v443, %v466
      %469 = vrot.lane.b32.xlu0 %v378, 1
      %v470 = vpop.permute.xlu0 %469
      %471 = vrot.lane.b32.xlu0 %v379, 1
      %v472 = vpop.permute.xlu0 %471
      %vm473 = vcmp.lt.s32.totalorder %v397, 1
      %v474 = vsel %vm473, %v470, %v472
      %v475 = vsel %vm473, %v472, %v470
      %v476 = vlaneseq
      %v477 = vshrl.u32 %v476, 7
      %v478 = vsub.s32 3, %v477
      %v479 = vrot.slane %v381, %v478
      %v480 = vlaneseq
      %v481 = vshrl.u32 %v480, 7
      %v482 = vsub.s32 3, %v481
      %v483 = vrot.slane %v382, %v482
      %484 = vset.pattern.permute.xlu0 3
      %485 = vperm.xlu0 %484, %v380
      %v486 = vpop.permute.xlu0 %485
      %v488 = vmul.f32 %v479, %v486
      %v489 = vmul.f32 %v483, %v486
      %v490 = vmul.f32 %v475, %v488
      %v491 = vmul.f32 %v474, %v489
      %v492 = vadd.f32 %v467, %v490
      %v493 = vadd.f32 %v468, %v491
      %494 = vrot.lane.b32.xlu0 %v378, 127
      %v495 = vpop.permute.xlu0 %494
      %496 = vrot.lane.b32.xlu0 %v379, 127
      %v497 = vpop.permute.xlu0 %496
      %vm498 = vcmp.lt.s32.totalorder %v397, 127
      %v499 = vsel %vm498, %v495, %v497
      %v500 = vsel %vm498, %v497, %v495
      %v501 = vlaneseq
      %v502 = vshrl.u32 %v501, 7
      %v503 = vsub.s32 5, %v502
      %v504 = vrot.slane %v381, %v503
      %v505 = vlaneseq
      %v506 = vshrl.u32 %v505, 7
      %v507 = vsub.s32 5, %v506
      %v508 = vrot.slane %v382, %v507
      %509 = vset.pattern.permute.xlu0 5
      %510 = vperm.xlu0 %509, %v380
      %v511 = vpop.permute.xlu0 %510
      %v513 = vmul.f32 %v504, %v511
      %v514 = vmul.f32 %v508, %v511
      %v515 = vmul.f32 %v499, %v513
      %v516 = vmul.f32 %v500, %v514
      %v517 = vadd.f32 %v492, %v515
      %v518 = vadd.f32 %v493, %v516
      %519 = vrot.lane.b32.xlu0 %v378, 113
      %v520 = vpop.permute.xlu0 %519
      %521 = vrot.lane.b32.xlu0 %v379, 113
      %v522 = vpop.permute.xlu0 %521
      %vm523 = vcmp.lt.s32.totalorder %v397, 113
      %v524 = vsel %vm523, %v520, %v522
      %v525 = vsel %vm523, %v522, %v520
      %v526 = vlaneseq
      %v527 = vshrl.u32 %v526, 7
      %v528 = vsub.s32 6, %v527
      %v529 = vrot.slane %v381, %v528
      %v530 = vlaneseq
      %v531 = vshrl.u32 %v530, 7
      %v532 = vsub.s32 6, %v531
      %v533 = vrot.slane %v382, %v532
      %534 = vset.pattern.permute.xlu0 6
      %535 = vperm.xlu0 %534, %v380
      %v536 = vpop.permute.xlu0 %535
      %v538 = vmul.f32 %v529, %v536
      %v539 = vmul.f32 %v533, %v536
      %v540 = vmul.f32 %v524, %v538
      %v541 = vmul.f32 %v525, %v539
      %v542 = vadd.f32 %v517, %v540
      %v543 = vadd.f32 %v518, %v541
      %544 = vrot.lane.b32.xlu0 %v378, 112
      %v545 = vpop.permute.xlu0 %544
      %546 = vrot.lane.b32.xlu0 %v379, 112
      %v547 = vpop.permute.xlu0 %546
      %vm548 = vcmp.lt.s32.totalorder %v397, 112
      %v549 = vsel %vm548, %v545, %v547
      %v550 = vsel %vm548, %v547, %v545
      %v551 = vlaneseq
      %v552 = vshrl.u32 %v551, 7
      %v553 = vsub.s32 7, %v552
      %v554 = vrot.slane %v381, %v553
      %v555 = vlaneseq
      %v556 = vshrl.u32 %v555, 7
      %v557 = vsub.s32 7, %v556
      %v558 = vrot.slane %v382, %v557
      %559 = vset.pattern.permute.xlu0 7
      %560 = vperm.xlu0 %559, %v380
      %v561 = vpop.permute.xlu0 %560
      %v563 = vmul.f32 %v554, %v561
      %v564 = vmul.f32 %v558, %v561
      %v565 = vmul.f32 %v549, %v563
      %v566 = vmul.f32 %v550, %v564
      %v567 = vadd.f32 %v542, %v565
      %v568 = vadd.f32 %v543, %v566
      %569 = vrot.lane.b32.xlu0 %v378, 111
      %v570 = vpop.permute.xlu0 %569
      %571 = vrot.lane.b32.xlu0 %v379, 111
      %v572 = vpop.permute.xlu0 %571
      %vm573 = vcmp.lt.s32.totalorder %v397, 111
      %v574 = vsel %vm573, %v570, %v572
      %v575 = vsel %vm573, %v572, %v570
      %v576 = vlaneseq
      %v577 = vshrl.u32 %v576, 7
      %v578 = vsub.s32 0, %v577
      %v579 = vrot.slane %v383, %v578
      %v580 = vlaneseq
      %v581 = vshrl.u32 %v580, 7
      %v582 = vsub.s32 0, %v581
      %v583 = vrot.slane %v384, %v582
      %584 = vset.pattern.permute.xlu0 8
      %585 = vperm.xlu0 %584, %v380
      %v586 = vpop.permute.xlu0 %585
      %v588 = vmul.f32 %v579, %v586
      %v589 = vmul.f32 %v583, %v586
      %v590 = vmul.f32 %v574, %v588
      %v591 = vmul.f32 %v575, %v589
      %v592 = vadd.f32 %v567, %v590
      %v593 = vadd.f32 %v568, %v591
      %v594 = vld [vmem:[%s4] sm:$0xf]
      %596 = vset.pattern.permute.xlu0 0
      %597 = vperm.xlu0 %596, %v594
      %v598 = vpop.permute.xlu0 %597
      %v600 = vlaneseq
      %v601 = vshrl.u32 %v600, 7
      %v602 = vsub.s32 0, %v601
      %v603 = vrot.slane %v592, %v602
      %v604 = vlaneseq
      %v605 = vshrl.u32 %v604, 7
      %v606 = vsub.s32 0, %v605
      %v607 = vrot.slane %v593, %v606
      %v608 = vmul.f32 %v598, %v603
      %v609 = vmul.f32 %v598, %v607
      %610 = vset.pattern.permute.xlu0 1
      %611 = vperm.xlu0 %610, %v594
      %v612 = vpop.permute.xlu0 %611
      %v614 = vlaneseq
      %v615 = vshrl.u32 %v614, 7
      %v616 = vsub.s32 1, %v615
      %v617 = vrot.slane %v592, %v616
      %v618 = vlaneseq
      %v619 = vshrl.u32 %v618, 7
      %v620 = vsub.s32 1, %v619
      %v621 = vrot.slane %v593, %v620
      %v622 = vmul.f32 %v612, %v617
      %v623 = vmul.f32 %v612, %v621
      %v624 = vadd.f32 %v608, %v622
      %v625 = vadd.f32 %v609, %v623
      %v626 = vld [vmem:[%s5] sm:$0xf]
      %628 = vset.pattern.permute.xlu0 0
      %629 = vperm.xlu0 %628, %v626
      %v630 = vpop.permute.xlu0 %629
      %v632 = vadd.f32 %v624, %v630
      %v633 = vadd.f32 %v625, %v630
      %v634 = vsub.f32 0.0, %v632
      %v635 = vsub.f32 0.0, %v633
      %v636 = vmul.f32 %v634, 1.442695
      %v637 = vpow.pop %v636
      %v638 = vmul.f32 %v635, 1.442695
      %v639 = vpow.pop %v638
      %v640 = vadd.f32 %v637, 1.0
      %v641 = vadd.f32 %v639, 1.0
      %v642 = vrcp.pop %v640
      %v643 = vrcp.pop %v641
      %v644 = vmul.f32 %v632, %v642
      %v645 = vmul.f32 %v633, %v643
      %v646 = vld [vmem:[%s6] sm:$0xf]
      %648 = vset.pattern.permute.xlu0 0
      %649 = vperm.xlu0 %648, %v646
      %v650 = vpop.permute.xlu0 %649
      %v652 = vlaneseq
      %v653 = vshrl.u32 %v652, 7
      %v654 = vsub.s32 0, %v653
      %v655 = vrot.slane %v306, %v654
      %v656 = vlaneseq
      %v657 = vshrl.u32 %v656, 7
      %v658 = vsub.s32 4, %v657
      %v659 = vrot.slane %v306, %v658
      %v662 = vlaneseq
      %v663 = vshrl.u32 %v662, 7
      %v664 = vsub.s32 0, %v663
      %v665 = vrot.slane %v655, %v664
      %v666 = vlaneseq
      %v667 = vshrl.u32 %v666, 7
      %v668 = vsub.s32 0, %v667
      %v669 = vrot.slane %v659, %v668
      %v670 = vmul.f32 %v650, %v665
      %v671 = vmul.f32 %v650, %v669
      %672 = vset.pattern.permute.xlu0 1
      %673 = vperm.xlu0 %672, %v646
      %v674 = vpop.permute.xlu0 %673
      %v676 = vlaneseq
      %v677 = vshrl.u32 %v676, 7
      %v678 = vsub.s32 1, %v677
      %v679 = vrot.slane %v306, %v678
      %v680 = vlaneseq
      %v681 = vshrl.u32 %v680, 7
      %v682 = vsub.s32 5, %v681
      %v683 = vrot.slane %v306, %v682
      %v686 = vlaneseq
      %v687 = vshrl.u32 %v686, 7
      %v688 = vsub.s32 1, %v687
      %v689 = vrot.slane %v679, %v688
      %v690 = vlaneseq
      %v691 = vshrl.u32 %v690, 7
      %v692 = vsub.s32 1, %v691
      %v693 = vrot.slane %v683, %v692
      %v694 = vmul.f32 %v674, %v689
      %v695 = vmul.f32 %v674, %v693
      %v696 = vadd.f32 %v670, %v694
      %v697 = vadd.f32 %v671, %v695
      %v698 = vadd.f32 %v644, %v696
      %v699 = vadd.f32 %v645, %v697
      %v702 = vcombine.low %v698, %v699
      %704 = vst [vmem:[%s305] sm:$0xff] %v702
      %p705 = scmp.lt.s32.totalorder %s19, 1
      %s706 = scalar_select %p705, %s19, 1
      %s707 = smul.addr %s706, 2
      %s708 = smul.addr %s707, 4
      %s709 = scalar_lea.vmem %s8, %s708
      // Predicated region
      $region53: #{inverted_residual1_forward.1} parent=51 // pred_check
        %p710 = pneg %p210
      $region54: #{inverted_residual1_forward.1} parent=51 // pred_check_branch
        %712 = sbr.rel (%p710) target = $region56
      $region55: #{inverted_residual1_forward.1} parent=51 // pred_region
        _
      $region56: #{inverted_residual1_forward.1} parent=51 // pred_fallthru
        _
    $region52: #{inverted_residual1_forward.1} parent=5 // pred_fallthru
      _
    %p713 = scmp.le.s32.totalorder 2, %s14
    // Predicated region
    $region57: #{inverted_residual1_forward.1} parent=5 // pred_check
      %p714 = pneg %p713
    $region58: #{inverted_residual1_forward.1} parent=5 // pred_check_branch
      %716 = sbr.rel (%p714) target = $region60
    $region59: #{inverted_residual1_forward.1} parent=5 // pred_region
      %s717 = ssub.s32 %s14, 2
      // Predicated region
      $region61: #{inverted_residual1_forward.1} parent=59 // pred_check
        %p718 = pneg %p216
      $region62: #{inverted_residual1_forward.1} parent=59 // pred_check_branch
        %720 = sbr.rel (%p718) target = $region64
      $region63: #{inverted_residual1_forward.1} parent=59 // pred_region
        %p721 = scmp.lt.s32.totalorder %s20, 1
        %s722 = scalar_select %p721, %s20, 1
        %s723 = smul.addr %s722, 2
        %s724 = smul.addr %s723, 4
        %s725 = scalar_lea.vmem %s8, %s724
      $region64: #{inverted_residual1_forward.1} parent=59 // pred_fallthru
        _
    $region60: #{inverted_residual1_forward.1} parent=5 // pred_fallthru
      _
  $region6: #{inverted_residual1_forward.1} parent=0 // loop_footer
    %s18 = sadd.s32 1, %s14
  $region7: #{inverted_residual1_forward.1} parent=0 // loop_footer_branch
    %13 = sbr.rel target = $region3
  $region8: #{inverted_residual1_forward.1} parent=0 // loop_exit
    _

</llo_original>
